<compile_context>
chip_gen: v7x
topology: tpu7x:2x2x1
jax: 0.10.0
libtpu: 0.0.40
codegen_flags: <defaults>
</compile_context>

<pallas_src>
import jax
import jax.numpy as jnp
import numpy as np
from jax import lax
from jax.experimental import pallas as pl
from jax.experimental.pallas import tpu as pltpu

GROUPS = 32
EPS = 1e-6


# --------------------------------------------------------------------------- #
# Pass 1: row-tiled GroupNorm statistics (per-channel sum / sum of squares).  #
# --------------------------------------------------------------------------- #
def _gn_stats_kernel(x_ref, sum_ref, sq_ref, acc_s, acc_q):
    # x_ref:          (1, TH, W, C) f32   one row tile of one batch element (NHWC)
    # sum_ref/sq_ref: (1, 1, C) f32       per-batch outputs (written on last tile)
    # acc_s/acc_q:    (1, C) f32          VMEM accumulators (persist across tiles)
    t = pl.program_id(1)
    C = x_ref.shape[-1]

    @pl.when(t == 0)
    def _():
        acc_s[...] = jnp.zeros_like(acc_s)
        acc_q[...] = jnp.zeros_like(acc_q)

    x = x_ref[0]
    acc_s[...] += jnp.sum(x, axis=(0, 1)).reshape(1, C)
    acc_q[...] += jnp.sum(x * x, axis=(0, 1)).reshape(1, C)

    @pl.when(t == pl.num_programs(1) - 1)
    def _():
        sum_ref[0] = acc_s[...]
        sq_ref[0] = acc_q[...]


# --------------------------------------------------------------------------- #
# Pass 2: normalize + conv_in(3x3) + SiLU + conv_out(3x3), one row tile/step. #
# --------------------------------------------------------------------------- #
def _embed_kernel(x_ref, top_ref, bot_ref, scale_ref, shift_ref,
                  w1_ref, b1_ref, w2_ref, b2_ref, out_ref, pad_ref, col_ref):
    # x_ref:       (1, TH, W, C) f32   current row tile
    # top_ref:     (1, 2,  W, C) f32   2 rows above the tile (ignored at t == 0)
    # bot_ref:     (1, 2,  W, C) f32   2 rows below the tile (ignored at t == T-1)
    # scale/shift: (1, 1, C) f32       folded GroupNorm affine (per batch element)
    # w1: (9C, C) bf16   b1: (1, C) f32      conv_in
    # w2: (9C, E) bf16   b2: (1, E) f32      conv_out
    # out_ref:     (1, TH, W, E) bf16
    # pad_ref:     (TH+4, W+2, C) bf16 shared zero-padded activation buffer
    # col_ref:     ((TH+2)*W, 9C) bf16 shared im2col buffer
    t = pl.program_id(1)
    T = pl.num_programs(1)
    TH4, Wp2, C = pad_ref.shape
    TH, W = TH4 - 4, Wp2 - 2
    E = out_ref.shape[-1]
    bf16 = jnp.bfloat16

    scale = scale_ref[...]                       # (1, 1, C) broadcasts over rows/cols
    shift = shift_ref[...]

    def norm(v):                                 # GroupNorm with precomputed stats
        return (v * scale + shift).astype(bf16)  # cast once for the bf16 conv path

    # Zero the 1-px column halo (rewritten every step -> no cross-step state).
    pad_ref[:, pl.ds(0, 1), :] = jnp.zeros((TH + 4, 1, C), bf16)
    pad_ref[:, pl.ds(W + 1, 1), :] = jnp.zeros((TH + 4, 1, C), bf16)

    # Normalized activations: 2-row halo above / below + TH-row interior.
    pad_ref[pl.ds(0, 2), pl.ds(1, W), :] = norm(top_ref[...].reshape(2, W, C))
    pad_ref[pl.ds(2, TH), pl.ds(1, W), :] = norm(x_ref[...].reshape(TH, W, C))
    pad_ref[pl.ds(TH + 2, 2), pl.ds(1, W), :] = norm(bot_ref[...].reshape(2, W, C))

    # Rows outside the image are the conv's zero padding (not 0*scale + shift).
    @pl.when(t == 0)
    def _():
        pad_ref[pl.ds(0, 2), :, :] = jnp.zeros((2, W + 2, C), bf16)

    @pl.when(t == T - 1)
    def _():
        pad_ref[pl.ds(TH + 2, 2), :, :] = jnp.zeros((2, W + 2, C), bf16)

    # TODO(synk): v5e micro-opt — lay col_ref out so each tap store starts on a
    # 128-lane boundary (narrow masked stores bind the single vst slot there).
    def im2col(nrows):
        m = nrows * W
        for ky in range(3):
            for kx in range(3):
                tap = ky * 3 + kx
                patch = pad_ref[pl.ds(ky, nrows), pl.ds(kx, W), :]
                col_ref[pl.ds(0, m), tap * C:(tap + 1) * C] = patch.reshape(m, C)

    # conv_in over TH+2 rows (1 extra row each side feeds conv_out's halo),
    # as ONE bf16 im2col matmul (K = 9C) with f32 accumulation.
    im2col(TH + 2)
    y1 = jnp.dot(col_ref[...], w1_ref[...],
                 preferred_element_type=jnp.float32) + b1_ref[...]
    y1 = y1 * jax.nn.sigmoid(y1)                 # SiLU in f32

    # conv_out: reuse the padded + im2col scratch (column halo still zero).
    pad_ref[pl.ds(0, TH + 2), pl.ds(1, W), :] = y1.reshape(TH + 2, W, C).astype(bf16)

    @pl.when(t == 0)
    def _():
        pad_ref[pl.ds(0, 1), :, :] = jnp.zeros((1, W + 2, C), bf16)

    @pl.when(t == T - 1)
    def _():
        pad_ref[pl.ds(TH + 1, 1), :, :] = jnp.zeros((1, W + 2, C), bf16)

    m2 = TH * W
    im2col(TH)
    y2 = jnp.dot(col_ref[pl.ds(0, m2), :], w2_ref[...],
                 preferred_element_type=jnp.float32) + b2_ref[...]
    out_ref[0] = y2.reshape(TH, W, E).astype(out_ref.dtype)


# --------------------------------------------------------------------------- #
# Wrappers                                                                    #
# --------------------------------------------------------------------------- #
def _rup(v, m):
    return (v + m - 1) // m * m


def _pick_tile_rows(H, W, C, E, budget_bytes=24 * 1024 * 1024):
    """Largest even divisor of H whose (lane-padding aware) per-tile VMEM fits."""
    lc = _rup(C, 128)
    le = _rup(E, 128)
    lk = _rup(9 * C, 128)

    def vmem_bytes(th):
        return (2 * th * W * lc * 4 + 2 * 2 * _rup(2, 8) * W * lc * 4  # x + halos (dbl buf)
                + 2 * th * W * le * 2                                  # bf16 out (dbl buf)
                + (th + 4) * _rup(W + 2, 16) * lc * 2                  # pad scratch (bf16)
                + (th + 2) * W * lk * 2                                # im2col scratch (bf16)
                + (th + 2) * W * lc * 4 + th * W * le * 4              # y1 / y2 f32 temporaries
                + 9 * C * (lc + le) * 2)                               # bf16 weights

    divisors = [d for d in range(2, H + 1, 2) if H % d == 0]
    for th in sorted(divisors, reverse=True):
        if vmem_bytes(th) <= budget_bytes:
            return th
    return divisors[0]


def controlnet_conditioning_embedding_nhwc(x_nhwc, params, *, tile_rows=None):
    """NHWC in -> NHWC bf16 out. Preferred entry point (no layout round trips)."""
    x = x_nhwc.astype(jnp.float32)
    N, H, W, C = x.shape
    E = params["w2"].shape[-1]
    assert C % GROUPS == 0, "GroupNorm(num_groups=32) requires channels % 32 == 0"
    assert H % 2 == 0, "row-halo blocking needs an even number of rows"
    TH = tile_rows if tile_rows is not None else _pick_tile_rows(H, W, C, E)
    assert H % TH == 0 and TH % 2 == 0, "tile_rows must be an even divisor of H"
    T = H // TH
    thb = TH // 2
    hb_last = H // 2 - 1

    # HWIO (3,3,Cin,Cout) -> (9*Cin, Cout); row order matches the kernel's im2col
    # tap order (ky*3+kx major, cin minor). Conv weights go in as bf16.
    w1 = params["w1"].reshape(9 * C, C).astype(jnp.bfloat16)
    b1 = params["b1"].reshape(1, C).astype(jnp.float32)
    w2 = params["w2"].reshape(9 * C, E).astype(jnp.bfloat16)
    b2 = params["b2"].reshape(1, E).astype(jnp.float32)

    # ---- pass 1: per-channel sum / sumsq, row-tiled accumulation in VMEM ----
    sum_nc, sq_nc = pl.pallas_call(
        _gn_stats_kernel,
        out_shape=(jax.ShapeDtypeStruct((N, 1, C), jnp.float32),
                   jax.ShapeDtypeStruct((N, 1, C), jnp.float32)),
        grid=(N, T),
        in_specs=[pl.BlockSpec((1, TH, W, C), lambda n, t: (n, t, 0, 0))],
        out_specs=(pl.BlockSpec((1, 1, C), lambda n, t: (n, 0, 0)),
                   pl.BlockSpec((1, 1, C), lambda n, t: (n, 0, 0))),
        scratch_shapes=[pltpu.VMEM((1, C), jnp.float32),
                        pltpu.VMEM((1, C), jnp.float32)],
        compiler_params=pltpu.CompilerParams(
            dimension_semantics=("parallel", "arbitrary")),
    )(x)

    # Tiny per-group math on (N, C): biased variance, eps, affine fold.
    # TODO(synk): a mean-subtracted second pass is numerically safer when |mean| >> std.
    cg = C // GROUPS
    cnt = jnp.float32(H * W * cg)
    gsum = sum_nc.reshape(N, GROUPS, cg).sum(axis=-1)
    gsq = sq_nc.reshape(N, GROUPS, cg).sum(axis=-1)
    gmean = gsum / cnt
    gvar = jnp.maximum(gsq / cnt - gmean * gmean, 0.0)
    ginv = lax.rsqrt(gvar + EPS)
    inv_c = jnp.repeat(ginv, cg, axis=1)                              # (N, C)
    mean_c = jnp.repeat(gmean, cg, axis=1)
    scale_c = inv_c * params["gn_w"].reshape(1, C).astype(jnp.float32)
    shift_c = params["gn_b"].reshape(1, C).astype(jnp.float32) - mean_c * scale_c
    scale_nc = scale_c.reshape(N, 1, C)
    shift_nc = shift_c.reshape(N, 1, C)

    # ---- pass 2: normalize + conv_in + SiLU + conv_out, one row tile / step ----
    cost = pl.CostEstimate(
        flops=2 * N * H * W * 9 * C * (C + E),
        transcendentals=N * H * W * C,
        bytes_accessed=(N * H * W * C * 4 + N * H * W * E * 2
                        + 9 * C * (C + E) * 2))

    out = pl.pallas_call(
        _embed_kernel,
        out_shape=jax.ShapeDtypeStruct((N, H, W, E), jnp.bfloat16),
        grid=(N, T),
        in_specs=[
            pl.BlockSpec((1, TH, W, C), lambda n, t: (n, t, 0, 0)),
            # 2-row halos above / below the tile (block units of 2 rows, clamped;
            # boundary contents are ignored — the kernel zeroes them).
            pl.BlockSpec((1, 2, W, C),
                         lambda n, t: (n, jnp.maximum(t * thb - 1, 0), 0, 0)),
            pl.BlockSpec((1, 2, W, C),
                         lambda n, t: (n, jnp.minimum((t + 1) * thb, hb_last), 0, 0)),
            pl.BlockSpec((1, 1, C), lambda n, t: (n, 0, 0)),          # scale
            pl.BlockSpec((1, 1, C), lambda n, t: (n, 0, 0)),          # shift
            pl.BlockSpec((9 * C, C), lambda n, t: (0, 0)),            # w1
            pl.BlockSpec((1, C), lambda n, t: (0, 0)),                # b1
            pl.BlockSpec((9 * C, E), lambda n, t: (0, 0)),            # w2
            pl.BlockSpec((1, E), lambda n, t: (0, 0)),                # b2
        ],
        out_specs=pl.BlockSpec((1, TH, W, E), lambda n, t: (n, t, 0, 0)),
        scratch_shapes=[
            pltpu.VMEM((TH + 4, W + 2, C), jnp.bfloat16),      # shared padded buffer
            pltpu.VMEM(((TH + 2) * W, 9 * C), jnp.bfloat16),   # shared im2col buffer
        ],
        compiler_params=pltpu.CompilerParams(
            dimension_semantics=("parallel", "parallel"),
            vmem_limit_bytes=48 * 1024 * 1024),
        cost_estimate=cost,
    )(x, x, x, scale_nc, shift_nc, w1, b1, w2, b2)
    return out


def controlnet_conditioning_embedding(x_nchw, params, *, tile_rows=None):
    """NCHW in -> NCHW out (PyTorch layout). Output is bf16.

    NOTE: prefer `controlnet_conditioning_embedding_nhwc` when the surrounding
    graph is NHWC — each boundary transpose here is a full HBM round trip.
    """
    x = jnp.transpose(x_nchw, (0, 2, 3, 1))                    # NCHW -> NHWC
    out = controlnet_conditioning_embedding_nhwc(x, params, tile_rows=tile_rows)
    return jnp.transpose(out, (0, 3, 1, 2))                    # NHWC -> NCHW


# --------------------------------------------------------------------------- #
# Parameters + pure-JAX reference                                             #
# --------------------------------------------------------------------------- #
def init_params(key, cond_channels, embed_channels):
    """Parameter shapes mirroring the module's __init__ (conv weights in HWIO)."""
    C, E = cond_channels, embed_channels
    k1, k2 = jax.random.split(key, 2)
    bound = 1.0 / np.sqrt(C * 9)
    return {
        "gn_w": jnp.ones((C,), jnp.float32),           # GroupNorm affine defaults
        "gn_b": jnp.zeros((C,), jnp.float32),
        "w1": jax.random.uniform(k1, (3, 3, C, C), jnp.float32, -bound, bound),
        "b1": jax.random.uniform(k2, (C,), jnp.float32, -bound, bound),
        "w2": jnp.zeros((3, 3, C, E), jnp.float32),    # zero_module(conv_out)
        "b2": jnp.zeros((E,), jnp.float32),
    }


def forward_ref(x_nchw, params):
    """Pure-JAX reference. Conv operands are cast to bf16 (f32 accumulation) to
    mirror the kernel's MXU precision policy; GroupNorm / SiLU stay in f32."""
    x = jnp.transpose(x_nchw, (0, 2, 3, 1)).astype(jnp.float32)
    N, H, W, C = x.shape
    cg = C // GROUPS
    xg = x.reshape(N, H, W, GROUPS, cg)
    mean = xg.mean(axis=(1, 2, 4), keepdims=True)
    var = ((xg - mean) ** 2).mean(axis=(1, 2, 4), keepdims=True)
    xn = ((xg - mean) / jnp.sqrt(var + EPS)).reshape(N, H, W, C)
    xn = xn * params["gn_w"] + params["gn_b"]
    dn = ("NHWC", "HWIO", "NHWC")
    y = lax.conv_general_dilated(xn.astype(jnp.bfloat16),
                                 params["w1"].astype(jnp.bfloat16),
                                 (1, 1), "SAME", dimension_numbers=dn,
                                 preferred_element_type=jnp.float32) + params["b1"]
    y = y * jax.nn.sigmoid(y)
    y = lax.conv_general_dilated(y.astype(jnp.bfloat16),
                                 params["w2"].astype(jnp.bfloat16),
                                 (1, 1), "SAME", dimension_numbers=dn,
                                 preferred_element_type=jnp.float32) + params["b2"]
    return jnp.transpose(y, (0, 3, 1, 2))


if __name__ == "__main__":
    def check(C, E, H, W, key, tile_rows=None):
        kx, kp, kw, kb, kg, kh = jax.random.split(key, 6)
        x = jax.random.normal(kx, (2, C, H, W), jnp.float32)
        p = init_params(kp, C, E)
        # Non-trivial conv_out + GroupNorm affine so the check is meaningful
        # (the faithful zero-initialized conv_out would make it trivial).
        p["w2"] = 0.05 * jax.random.normal(kw, (3, 3, C, E), jnp.float32)
        p["b2"] = 0.05 * jax.random.normal(kb, (E,), jnp.float32)
        p["gn_w"] = 1.0 + 0.1 * jax.random.normal(kg, (C,), jnp.float32)
        p["gn_b"] = 0.1 * jax.random.normal(kh, (C,), jnp.float32)
        got = jax.block_until_ready(
            controlnet_conditioning_embedding(x, p, tile_rows=tile_rows))
        want = jax.block_until_ready(forward_ref(x, p))
        np.testing.assert_allclose(np.asarray(jnp.asarray(got, jnp.float32)),
                                   np.asarray(want), rtol=2e-2, atol=2e-2)

    key = jax.random.PRNGKey(0)
    k1, k2, k3 = jax.random.split(key, 3)
    # GroupNorm(num_groups=32) requires C % 32 == 0, so the module's default
    # conditioning_channels=4 is not constructible in PyTorch either.
    # C=32 (cg=1) with 4 row tiles exercises first / middle / last halo paths;
    # C=64 (cg=2) uses auto tiling (single tile) and the per-group reduction.
    check(C=32, E=64, H=16, W=16, key=k1, tile_rows=4)
    check(C=64, E=96, H=8, W=8, key=k2)

    # Faithful module parameters: conv_out is zero-initialized (zero_module),
    # so the embedding is exactly zero at init.
    N, C, H, W, E = 2, 32, 16, 16, 64
    x = jax.random.normal(k3, (N, C, H, W), jnp.float32)
    params = init_params(jax.random.PRNGKey(1), C, E)
    out = jax.block_until_ready(controlnet_conditioning_embedding(x, params))
    assert out.shape == (N, E, H, W)
    assert out.dtype == jnp.bfloat16
    assert float(jnp.max(jnp.abs(out.astype(jnp.float32)))) == 0.0

    print("KERNEL_OK")
</pallas_src>

<mosaic_0001>
module attributes {stable_mosaic.version = 11 : i64} {
  func.func @_gn_stats_kernel(%arg0: i32, %arg1: i32, %arg2: memref<1x4x16x32xf32, #tpu.memory_space<vmem>>, %arg3: memref<1x1x32xf32, #tpu.memory_space<vmem>>, %arg4: memref<1x1x32xf32, #tpu.memory_space<vmem>>, %arg5: memref<1x32xf32, #tpu.memory_space<vmem>>, %arg6: memref<1x32xf32, #tpu.memory_space<vmem>>) attributes {dimension_semantics = [#tpu.dimension_semantics<parallel>, #tpu.dimension_semantics<arbitrary>], iteration_bounds = array<i64: 2, 4>, scalar_prefetch = 0 : i64, scratch_operands = 2 : i64, tpu.core_type = #tpu.core_type<tc>, window_params = [{transform_indices = @transform_0, window_bounds = array<i64: 1, 4, 16, 32>}, {transform_indices = @transform_1, window_bounds = array<i64: 1, 1, 32>}, {transform_indices = @transform_2, window_bounds = array<i64: 1, 1, 32>}]} {
    %c0_i32 = arith.constant 0 : i32
    %0 = arith.cmpi eq, %arg1, %c0_i32 : i32
    %1 = arith.extui %0 : i1 to i32
    %c0_i32_0 = arith.constant 0 : i32
    %2 = arith.cmpi ne, %1, %c0_i32_0 : i32
    scf.if %2 {
      %cst_14 = arith.constant 0.000000e+00 : f32
      %19 = vector.broadcast %cst_14 : f32 to vector<1x32xf32>
      %c0_15 = arith.constant 0 : index
      %c0_16 = arith.constant 0 : index
      %20 = vector.load %arg5[%c0_15, %c0_16] : memref<1x32xf32, #tpu.memory_space<vmem>>, vector<1x32xf32>
      tpu.vector_store %arg5[%c0_15, %c0_16], %19 {strides = array<i32>} : memref<1x32xf32, #tpu.memory_space<vmem>>, vector<1x32xf32>,
      %cst_17 = arith.constant 0.000000e+00 : f32
      %21 = vector.broadcast %cst_17 : f32 to vector<1x32xf32>
      %c0_18 = arith.constant 0 : index
      %c0_19 = arith.constant 0 : index
      %22 = vector.load %arg6[%c0_18, %c0_19] : memref<1x32xf32, #tpu.memory_space<vmem>>, vector<1x32xf32>
      tpu.vector_store %arg6[%c0_18, %c0_19], %21 {strides = array<i32>} : memref<1x32xf32, #tpu.memory_space<vmem>>, vector<1x32xf32>,
    } else {
    }
    %c0 = arith.constant 0 : index
    %c0_1 = arith.constant 0 : index
    %c0_2 = arith.constant 0 : index
    %c0_3 = arith.constant 0 : index
    %3 = vector.load %arg2[%c0, %c0_1, %c0_2, %c0_3] : memref<1x4x16x32xf32, #tpu.memory_space<vmem>>, vector<1x4x16x32xf32>
    %4 = vector.shape_cast %3 : vector<1x4x16x32xf32> to vector<4x16x32xf32>
    %c0_4 = arith.constant 0 : index
    %c0_5 = arith.constant 0 : index
    %5 = vector.load %arg5[%c0_4, %c0_5] : memref<1x32xf32, #tpu.memory_space<vmem>>, vector<1x32xf32>
    %cst = arith.constant dense<0.000000e+00> : vector<32xf32>
    %6 = vector.multi_reduction <add>, %4, %cst [0, 1] : vector<4x16x32xf32> to vector<32xf32>
    %7 = vector.shape_cast %6 : vector<32xf32> to vector<1x32xf32>
    %8 = arith.addf %5, %7 : vector<1x32xf32>
    %c0_6 = arith.constant 0 : index
    %c0_7 = arith.constant 0 : index
    %9 = vector.load %arg5[%c0_6, %c0_7] : memref<1x32xf32, #tpu.memory_space<vmem>>, vector<1x32xf32>
    tpu.vector_store %arg5[%c0_6, %c0_7], %8 {strides = array<i32>} : memref<1x32xf32, #tpu.memory_space<vmem>>, vector<1x32xf32>,
    %c0_8 = arith.constant 0 : index
    %c0_9 = arith.constant 0 : index
    %10 = vector.load %arg6[%c0_8, %c0_9] : memref<1x32xf32, #tpu.memory_space<vmem>>, vector<1x32xf32>
    %11 = arith.mulf %4, %4 : vector<4x16x32xf32>
    %cst_10 = arith.constant dense<0.000000e+00> : vector<32xf32>
    %12 = vector.multi_reduction <add>, %11, %cst_10 [0, 1] : vector<4x16x32xf32> to vector<32xf32>
    %13 = vector.shape_cast %12 : vector<32xf32> to vector<1x32xf32>
    %14 = arith.addf %10, %13 : vector<1x32xf32>
    %c0_11 = arith.constant 0 : index
    %c0_12 = arith.constant 0 : index
    %15 = vector.load %arg6[%c0_11, %c0_12] : memref<1x32xf32, #tpu.memory_space<vmem>>, vector<1x32xf32>
    tpu.vector_store %arg6[%c0_11, %c0_12], %14 {strides = array<i32>} : memref<1x32xf32, #tpu.memory_space<vmem>>, vector<1x32xf32>,
    %c3_i32 = arith.constant 3 : i32
    %16 = arith.cmpi eq, %arg1, %c3_i32 : i32
    %17 = arith.extui %16 : i1 to i32
    %c0_i32_13 = arith.constant 0 : i32
    %18 = arith.cmpi ne, %17, %c0_i32_13 : i32
    scf.if %18 {
      %c0_14 = arith.constant 0 : index
      %c0_15 = arith.constant 0 : index
      %19 = vector.load %arg5[%c0_14, %c0_15] : memref<1x32xf32, #tpu.memory_space<vmem>>, vector<1x32xf32>
      %c0_16 = arith.constant 0 : index
      %c0_17 = arith.constant 0 : index
      %c0_18 = arith.constant 0 : index
      %20 = vector.load %arg3[%c0_16, %c0_17, %c0_18] : memref<1x1x32xf32, #tpu.memory_space<vmem>>, vector<1x1x32xf32>
      %21 = vector.shape_cast %20 : vector<1x1x32xf32> to vector<1x32xf32>
      %22 = vector.shape_cast %19 : vector<1x32xf32> to vector<1x1x32xf32>
      tpu.vector_store %arg3[%c0_16, %c0_17, %c0_18], %22 {strides = array<i32>} : memref<1x1x32xf32, #tpu.memory_space<vmem>>, vector<1x1x32xf32>,
      %c0_19 = arith.constant 0 : index
      %c0_20 = arith.constant 0 : index
      %23 = vector.load %arg6[%c0_19, %c0_20] : memref<1x32xf32, #tpu.memory_space<vmem>>, vector<1x32xf32>
      %c0_21 = arith.constant 0 : index
      %c0_22 = arith.constant 0 : index
      %c0_23 = arith.constant 0 : index
      %24 = vector.load %arg4[%c0_21, %c0_22, %c0_23] : memref<1x1x32xf32, #tpu.memory_space<vmem>>, vector<1x1x32xf32>
      %25 = vector.shape_cast %24 : vector<1x1x32xf32> to vector<1x32xf32>
      %26 = vector.shape_cast %23 : vector<1x32xf32> to vector<1x1x32xf32>
      tpu.vector_store %arg4[%c0_21, %c0_22, %c0_23], %26 {strides = array<i32>} : memref<1x1x32xf32, #tpu.memory_space<vmem>>, vector<1x1x32xf32>,
    } else {
    }
    return
  }
  func.func @transform_0(%arg0: i32, %arg1: i32) -> (i32, i32, i32, i32) {
    %c0_i32 = arith.constant 0 : i32
    %c0_i32_0 = arith.constant 0 : i32
    %c0_i32_1 = arith.constant 0 : i32
    return %arg0, %arg1, %c0_i32, %c0_i32_0 : i32, i32, i32, i32
  }
  func.func @transform_1(%arg0: i32, %arg1: i32) -> (i32, i32, i32) {
    %c0_i32 = arith.constant 0 : i32
    %c0_i32_0 = arith.constant 0 : i32
    %c0_i32_1 = arith.constant 0 : i32
    return %arg0, %c0_i32, %c0_i32_0 : i32, i32, i32
  }
  func.func @transform_2(%arg0: i32, %arg1: i32) -> (i32, i32, i32) {
    %c0_i32 = arith.constant 0 : i32
    %c0_i32_0 = arith.constant 0 : i32
    %c0_i32_1 = arith.constant 0 : i32
    return %arg0, %c0_i32, %c0_i32_0 : i32, i32, i32
  }
}

</mosaic_0001>

<llo_original>
// kernel: tpu_custom_call.1
$region0: #{tpu_custom_call.1}
  #allocation0 [shape = 'u32[]', space=smem, size = 0x4, offset = 0x4, fixed_abs, tag = 'smem constant byte address 0x4 - core index']
  #allocation1 [shape = 'u32[144,128]{1,0:T(1,128)}', space=vmem, size = 0x12000, scoped, tag = 'internal scratch']
  #allocation2 [shape = 'f32[1,32]{1,0:T(1,128)}', space=vmem, size = 0x200, scoped, tag = 'scratch operand']
  #allocation3 [shape = 'f32[1,32]{1,0:T(1,128)}', space=vmem, size = 0x200, scoped, tag = 'scratch operand']
  %s0 = inlined_call_operand.hbm [shape: f32[2,16,16,32], index: 0, kind: input, shape index: {}]
  %s1 = inlined_call_operand.hbm [shape: f32[2,1,32], index: 1, kind: output, shape index: {0}]
  %s2 = inlined_call_operand.hbm [shape: f32[2,1,32], index: 2, kind: output, shape index: {1}]
  %3 = xla_tuple %s1, %s2
  %s4 = sld [smem:[#allocation0]]
  $region57: #{tpu_custom_call.1} parent=0
    _
  %s6 = ssub.s32 1, %s4
  %s7 = scalar_select 0, %s6, %s4
  $region1: #{tpu_custom_call.1} parent=0
    #allocation4 [shape = 'u8[65536]{0}', space=vmem, size = 0x10000, scoped, tag = 'input window, operand 0']
    #allocation5 [shape = 's32[2]{0}', space=sflag, size = 0x8, scoped, tag = 'scoped memory for tpu_custom_call.1']
    #allocation6 [shape = 's32[2]{0}', space=sflag, size = 0x8, scoped, tag = 'scoped memory for tpu_custom_call.1']
    #allocation7 [shape = 'u8[1024]{0}', space=vmem, size = 0x400, scoped, tag = 'output window, operand 0']
    #allocation8 [shape = 'u8[1024]{0}', space=vmem, size = 0x400, scoped, tag = 'output window, operand 1']
    #allocation9 [shape = 's32[2]{0}', space=sflag, size = 0x8, scoped, tag = 'scoped memory for tpu_custom_call.1']
    %8 = vsyncpa [#allocation5], 0
    %s9 = scalar_lea.sflag [#allocation5], 1
    %10 = vsyncpa %s9, 0
    %11 = vsyncpa [#allocation6], 0
    %s12 = scalar_lea.sflag [#allocation6], 1
    %13 = vsyncpa %s12, 0
    %14 = vsyncpa [#allocation9], 0
    %s15 = scalar_lea.sflag [#allocation9], 1
    %16 = vsyncpa %s15, 0
    loop: start=0, step=1, limit=10
    $region2: #{tpu_custom_call.1} parent=1 // loop_pre_header
      _
    $region3: #{tpu_custom_call.1} parent=1 // loop_header
      %s18 = sphi 0, %s22
      %p19 = scmp.ge.s32.totalorder %s18, 10
      %s25 = sphi 0, %s37
      %s26 = sphi 0, %s33
      %s27 = sphi 0, %s25
      %s28 = sphi 0, %s26
      %s29 = sphi 0, %s27
      %s30 = sphi 0, %s28
      %s42 = sphi 0, %s44
      %s45 = sphi 0, %s42
      %s46 = sphi 0, %s45
      %s62 = sphi 0, %s46
      %s68 = sphi 0, %s70
      %s71 = sphi 0, %s68
      %s72 = sphi 0, %s71
      %s88 = sphi 0, %s72
      %s94 = sphi 0, %s96
      %s97 = sphi 0, %s94
      %s98 = sphi 0, %s97
      %s114 = sphi 0, %s98
    $region4: #{tpu_custom_call.1} parent=1 // loop_header_branch
      %21 = sbr.rel (%p19) target = $region8
    $region5: #{tpu_custom_call.1} parent=1 // loop_body
      %s23 = ssub.s32 %s18, 1
      %s24 = ssub.s32 %s18, 2
      %s31 = sadd.s32 1, %s26
      %p32 = scmp.ge.s32.totalorder %s31, 4
      %s33 = scalar_select %p32, 0, %s31
      %s34 = sadd.s32 1, %s25
      %s35 = scalar_select %p32, %s34, %s25
      %p36 = scmp.ge.s32.totalorder %s35, 2
      %s37 = scalar_select %p36, 0, %s35
      %s38 = ssub.s32 %s25, %s37
      %s39 = ssub.s32 %s26, %s33
      %s40 = sor.u32 %s38, %s39
      %p41 = scmp.eq.s32.totalorder %s40, 0
      %s43 = sadd.s32 %s42, 1
      %s44 = scalar_select %p41, %s42, %s43
      %p47 = pneg %p41
      %p48 = scmp.eq.s32.totalorder %s18, 7
      %p49 = por %p47, %p48
      %p50 = scmp.ne.s32.totalorder %s42, %s45
      %p51 = scmp.eq.s32.totalorder %s18, 0
      %p52 = por %p50, %p51
      %p53 = scmp.ne.s32.totalorder %s42, %s45
      %p54 = scmp.eq.s32.totalorder %s23, 7
      %p55 = por %p53, %p54
      %p56 = scmp.ne.s32.totalorder %s45, %s46
      %p57 = scmp.eq.s32.totalorder %s23, 0
      %p58 = por %p56, %p57
      %p59 = scmp.ne.s32.totalorder %s45, %s46
      %p60 = scmp.eq.s32.totalorder %s24, 7
      %p61 = por %p59, %p60
      %p63 = scmp.ne.s32.totalorder %s46, %s62
      %p64 = scmp.eq.s32.totalorder %s24, 0
      %p65 = por %p63, %p64
      %s66 = ssub.s32 %s25, %s37
      %p67 = scmp.eq.s32.totalorder %s66, 0
      %s69 = sadd.s32 %s68, 1
      %s70 = scalar_select %p67, %s68, %s69
      %p73 = pneg %p67
      %p74 = scmp.eq.s32.totalorder %s18, 7
      %p75 = por %p73, %p74
      %p76 = scmp.ne.s32.totalorder %s68, %s71
      %p77 = scmp.eq.s32.totalorder %s18, 0
      %p78 = por %p76, %p77
      %p79 = scmp.ne.s32.totalorder %s68, %s71
      %p80 = scmp.eq.s32.totalorder %s23, 7
      %p81 = por %p79, %p80
      %p82 = scmp.ne.s32.totalorder %s71, %s72
      %p83 = scmp.eq.s32.totalorder %s23, 0
      %p84 = por %p82, %p83
      %p85 = scmp.ne.s32.totalorder %s71, %s72
      %p86 = scmp.eq.s32.totalorder %s24, 7
      %p87 = por %p85, %p86
      %p89 = scmp.ne.s32.totalorder %s72, %s88
      %p90 = scmp.eq.s32.totalorder %s24, 0
      %p91 = por %p89, %p90
      %s92 = ssub.s32 %s25, %s37
      %p93 = scmp.eq.s32.totalorder %s92, 0
      %s95 = sadd.s32 %s94, 1
      %s96 = scalar_select %p93, %s94, %s95
      %p99 = pneg %p93
      %p100 = scmp.eq.s32.totalorder %s18, 7
      %p101 = por %p99, %p100
      %p102 = scmp.ne.s32.totalorder %s94, %s97
      %p103 = scmp.eq.s32.totalorder %s18, 0
      %p104 = por %p102, %p103
      %p105 = scmp.ne.s32.totalorder %s94, %s97
      %p106 = scmp.eq.s32.totalorder %s23, 7
      %p107 = por %p105, %p106
      %p108 = scmp.ne.s32.totalorder %s97, %s98
      %p109 = scmp.eq.s32.totalorder %s23, 0
      %p110 = por %p108, %p109
      %p111 = scmp.ne.s32.totalorder %s97, %s98
      %p112 = scmp.eq.s32.totalorder %s24, 7
      %p113 = por %p111, %p112
      %p115 = scmp.ne.s32.totalorder %s98, %s114
      %p116 = scmp.eq.s32.totalorder %s24, 0
      %p117 = por %p115, %p116
      %p118 = scmp.le.s32.totalorder 1, %s18
      %p119 = scmp.lt.s32.totalorder %s18, 9
      %p120 = pnand %p118, %p119
      %p121 = pneg %p120
      // Predicated region
      $region9: #{tpu_custom_call.1} parent=5 // pred_check
        _
      $region10: #{tpu_custom_call.1} parent=5 // pred_check_branch
        %123 = sbr.rel (%p120) target = $region12
      $region11: #{tpu_custom_call.1} parent=5 // pred_region
        %s124 = ssub.s32 %s18, 1
      $region12: #{tpu_custom_call.1} parent=5 // pred_fallthru
        _
      %p125 = scmp.lt.s32.totalorder %s18, 8
      // Predicated region
      $region13: #{tpu_custom_call.1} parent=5 // pred_check
        %p126 = pneg %p125
      $region14: #{tpu_custom_call.1} parent=5 // pred_check_branch
        %128 = sbr.rel (%p126) target = $region16
      $region15: #{tpu_custom_call.1} parent=5 // pred_region
        // Predicated region
        $region17: #{tpu_custom_call.1} parent=15 // pred_check
          %p129 = pneg %p52
        $region18: #{tpu_custom_call.1} parent=15 // pred_check_branch
          %131 = sbr.rel (%p129) target = $region20
        $region19: #{tpu_custom_call.1} parent=15 // pred_region
          %s132 = sand.u32 %s42, 1
          %s133 = scalar_lea.sflag [#allocation5], %s132
          %s134 = sand.u32 %s42, 1
          %s135 = smul.addr %s134, 64
          %s136 = scalar_lea.vmem [#allocation4], %s135
          %s137 = smul.u32 4, %s26
          %s139 = ssub.s32 1024, 1024
          %140 = vsyncadd %s133, %s139
          %s141 = smul.addr %s137, 2
          %s142 = smul.addr %s25, 32
          %s143 = sadd.s32 %s141, %s142
          %s144 = smul.addr %s143, 128
          %s145 = scalar_lea.hbm %s0, %s144
          %s146 = sshll.u32 %s136, 4
          %s147 = int_to_ptr.vmem [resolvable:$true] %s146
          %152 = dma.hbm_to_vmem [thread:$0]  %s145, 1024, %s147, %s133, 128, 128, 8
        $region20: #{tpu_custom_call.1} parent=15 // pred_fallthru
          _
      $region16: #{tpu_custom_call.1} parent=5 // pred_fallthru
        _
      %p153 = scmp.le.s32.totalorder 1, %s18
      %p154 = scmp.lt.s32.totalorder %s18, 9
      %p155 = pnand %p153, %p154
      %p156 = pneg %p155
      // Predicated region
      $region21: #{tpu_custom_call.1} parent=5 // pred_check
        _
      $region22: #{tpu_custom_call.1} parent=5 // pred_check_branch
        %158 = sbr.rel (%p155) target = $region24
      $region23: #{tpu_custom_call.1} parent=5 // pred_region
        %s159 = ssub.s32 %s18, 1
        %s160 = sand.u32 %s45, 1
        %s161 = scalar_lea.sflag [#allocation5], %s160
        %s162 = sand.u32 %s45, 1
        %s163 = smul.addr %s162, 64
        %s164 = scalar_lea.vmem [#allocation4], %s163
        // Predicated region
        $region25: #{tpu_custom_call.1} parent=23 // pred_check
          %p165 = pneg %p58
        $region26: #{tpu_custom_call.1} parent=23 // pred_check_branch
          %167 = sbr.rel (%p165) target = $region28
        $region27: #{tpu_custom_call.1} parent=23 // pred_region
          %168 = dma.done %s161, 1024
        $region28: #{tpu_custom_call.1} parent=23 // pred_fallthru
          _
        %s169 = sand.u32 %s45, 1
        %s170 = scalar_lea.sflag [#allocation5], %s169
        %s171 = sand.u32 %s45, 1
        %s172 = smul.addr %s171, 64
        %s173 = scalar_lea.vmem [#allocation4], %s172
        %p174 = pneg %p58
        %p175 = pneg %p55
        %p176 = pneg %p84
        %p177 = pneg %p81
        %s178 = sand.u32 %s71, 1
        %s179 = scalar_lea.sflag [#allocation6], %s178
        %s180 = sand.u32 %s71, 1
        %s181 = scalar_lea.vmem [#allocation7], %s180
        %p182 = pneg %p110
        %p183 = pneg %p107
        %s184 = sand.u32 %s97, 1
        %s185 = scalar_lea.sflag [#allocation9], %s184
        %s186 = sand.u32 %s97, 1
        %s187 = scalar_lea.vmem [#allocation8], %s186
        %s188 = smul.u32 4, %s28
        %p189 = scmp.eq.s32.totalorder %s28, 0
        // Predicated region
        $region29: #{tpu_custom_call.1} parent=23 // pred_check
          %p190 = pneg %p189
        $region30: #{tpu_custom_call.1} parent=23 // pred_check_branch
          %192 = sbr.rel (%p190) target = $region32
        $region31: #{tpu_custom_call.1} parent=23 // pred_region
          %vm193 = vcmask 253952
          %194 = vst.msk [vmem:[#allocation2] sm:$0x1] %vm193, 0.0
          %195 = vst.msk [vmem:[#allocation3] sm:$0x1] %vm193, 0.0
        $region32: #{tpu_custom_call.1} parent=23 // pred_fallthru
          _
        %v196 = vld [vmem:[%s164] sm:$0xff]
        %v197 = vld [vmem:[%s164 + $0x8] sm:$0xff]
        %v198 = vld [vmem:[%s164 + $0x10] sm:$0xff]
        %v199 = vld [vmem:[%s164 + $0x18] sm:$0xff]
        %v200 = vld [vmem:[%s164 + $0x20] sm:$0xff]
        %v201 = vld [vmem:[%s164 + $0x28] sm:$0xff]
        %v202 = vld [vmem:[%s164 + $0x30] sm:$0xff]
        %v203 = vld [vmem:[%s164 + $0x38] sm:$0xff]
        %v204 = vld [vmem:[#allocation2] sm:$0x1]
        %vm205 = vcmask 261120
        %v206 = vsel %vm205, %v196, 0.0
        %v207 = vsel %vm205, %v197, 0.0
        %v208 = vadd.f32 %v206, %v207
        %v209 = vsel %vm205, %v198, 0.0
        %v210 = vadd.f32 %v208, %v209
        %v211 = vsel %vm205, %v199, 0.0
        %v212 = vadd.f32 %v210, %v211
        %v213 = vsel %vm205, %v200, 0.0
        %v214 = vadd.f32 %v212, %v213
        %v215 = vsel %vm205, %v201, 0.0
        %v216 = vadd.f32 %v214, %v215
        %v217 = vsel %vm205, %v202, 0.0
        %v218 = vadd.f32 %v216, %v217
        %v219 = vsel %vm205, %v203, 0.0
        %v220 = vadd.f32 %v218, %v219
        %v221 = vrot.slane %v220, 4
        %v222 = vadd.f32 %v220, %v221
        %v223 = vrot.slane %v222, 2
        %v224 = vadd.f32 %v222, %v223
        %v225 = vrot.slane %v224, 1
        %v226 = vadd.f32 %v224, %v225
        %v227 = vadd.f32 %v204, %v226
        %vm228 = vcmask 253952
        %229 = vst.msk [vmem:[#allocation2] sm:$0x1] %vm228, %v227
        %v230 = vld [vmem:[#allocation3] sm:$0x1]
        %v231 = vmul.f32 %v196, %v196
        %v232 = vmul.f32 %v197, %v197
        %v233 = vmul.f32 %v198, %v198
        %v234 = vmul.f32 %v199, %v199
        %v235 = vmul.f32 %v200, %v200
        %v236 = vmul.f32 %v201, %v201
        %v237 = vmul.f32 %v202, %v202
        %v238 = vmul.f32 %v203, %v203
        %v239 = vsel %vm205, %v231, 0.0
        %v240 = vsel %vm205, %v232, 0.0
        %v241 = vadd.f32 %v239, %v240
        %v242 = vsel %vm205, %v233, 0.0
        %v243 = vadd.f32 %v241, %v242
        %v244 = vsel %vm205, %v234, 0.0
        %v245 = vadd.f32 %v243, %v244
        %v246 = vsel %vm205, %v235, 0.0
        %v247 = vadd.f32 %v245, %v246
        %v248 = vsel %vm205, %v236, 0.0
        %v249 = vadd.f32 %v247, %v248
        %v250 = vsel %vm205, %v237, 0.0
        %v251 = vadd.f32 %v249, %v250
        %v252 = vsel %vm205, %v238, 0.0
        %v253 = vadd.f32 %v251, %v252
        %v254 = vrot.slane %v253, 4
        %v255 = vadd.f32 %v253, %v254
        %v256 = vrot.slane %v255, 2
        %v257 = vadd.f32 %v255, %v256
        %v258 = vrot.slane %v257, 1
        %v259 = vadd.f32 %v257, %v258
        %v260 = vadd.f32 %v230, %v259
        %261 = vst.msk [vmem:[#allocation3] sm:$0x1] %vm228, %v260
        %p262 = scmp.eq.s32.totalorder %s28, 3
        // Predicated region
        $region33: #{tpu_custom_call.1} parent=23 // pred_check
          %p263 = pneg %p262
        $region34: #{tpu_custom_call.1} parent=23 // pred_check_branch
          %265 = sbr.rel (%p263) target = $region36
        $region35: #{tpu_custom_call.1} parent=23 // pred_region
          %v266 = vld [vmem:[#allocation2] sm:$0x1]
          %267 = vst.msk [vmem:[%s181] sm:$0x1] %vm228, %v266
          %v268 = vld [vmem:[#allocation3] sm:$0x1]
          %269 = vst.msk [vmem:[%s187] sm:$0x1] %vm228, %v268
        $region36: #{tpu_custom_call.1} parent=23 // pred_fallthru
          _
        %s270 = sand.u32 %s71, 1
        %s271 = scalar_lea.sflag [#allocation6], %s270
        %s272 = sand.u32 %s71, 1
        %s273 = scalar_lea.vmem [#allocation7], %s272
        %s274 = sand.u32 %s97, 1
        %s275 = scalar_lea.sflag [#allocation9], %s274
        %s276 = sand.u32 %s97, 1
        %s277 = scalar_lea.vmem [#allocation8], %s276
        // Predicated region
        $region37: #{tpu_custom_call.1} parent=23 // pred_check
          %p278 = pneg %p81
        $region38: #{tpu_custom_call.1} parent=23 // pred_check_branch
          %280 = sbr.rel (%p278) target = $region40
        $region39: #{tpu_custom_call.1} parent=23 // pred_region
          %s282 = ssub.s32 16, 16
          %283 = vsyncadd %s271, %s282
          %s284 = smul.addr %s27, 16
          %s285 = scalar_lea.hbm %s1, %s284
          %s287 = sshll.u32 %s273, 4
          %s288 = int_to_ptr.vmem [resolvable:$true] %s287
          %290 = dma.vmem_to_hbm [thread:$0]  %s288, 16, %s285, %s271
        $region40: #{tpu_custom_call.1} parent=23 // pred_fallthru
          _
        // Predicated region
        $region41: #{tpu_custom_call.1} parent=23 // pred_check
          %p291 = pneg %p107
        $region42: #{tpu_custom_call.1} parent=23 // pred_check_branch
          %293 = sbr.rel (%p291) target = $region44
        $region43: #{tpu_custom_call.1} parent=23 // pred_region
          %s295 = ssub.s32 16, 16
          %296 = vsyncadd %s275, %s295
          %s297 = smul.addr %s27, 16
          %s298 = scalar_lea.hbm %s2, %s297
          %s300 = sshll.u32 %s277, 4
          %s301 = int_to_ptr.vmem [resolvable:$true] %s300
          %303 = dma.vmem_to_hbm [thread:$0]  %s301, 16, %s298, %s275
        $region44: #{tpu_custom_call.1} parent=23 // pred_fallthru
          _
      $region24: #{tpu_custom_call.1} parent=5 // pred_fallthru
        _
      %p304 = scmp.le.s32.totalorder 2, %s18
      // Predicated region
      $region45: #{tpu_custom_call.1} parent=5 // pred_check
        %p305 = pneg %p304
      $region46: #{tpu_custom_call.1} parent=5 // pred_check_branch
        %307 = sbr.rel (%p305) target = $region48
      $region47: #{tpu_custom_call.1} parent=5 // pred_region
        %s308 = ssub.s32 %s18, 2
        // Predicated region
        $region49: #{tpu_custom_call.1} parent=47 // pred_check
          %p309 = pneg %p87
        $region50: #{tpu_custom_call.1} parent=47 // pred_check_branch
          %311 = sbr.rel (%p309) target = $region52
        $region51: #{tpu_custom_call.1} parent=47 // pred_region
          %s312 = sand.u32 %s72, 1
          %s313 = scalar_lea.sflag [#allocation6], %s312
          %s314 = sand.u32 %s72, 1
          %s315 = scalar_lea.vmem [#allocation7], %s314
          %316 = dma.done %s313, 16
        $region52: #{tpu_custom_call.1} parent=47 // pred_fallthru
          _
        // Predicated region
        $region53: #{tpu_custom_call.1} parent=47 // pred_check
          %p317 = pneg %p113
        $region54: #{tpu_custom_call.1} parent=47 // pred_check_branch
          %319 = sbr.rel (%p317) target = $region56
        $region55: #{tpu_custom_call.1} parent=47 // pred_region
          %s320 = sand.u32 %s98, 1
          %s321 = scalar_lea.sflag [#allocation9], %s320
          %s322 = sand.u32 %s98, 1
          %s323 = scalar_lea.vmem [#allocation8], %s322
          %324 = dma.done %s321, 16
        $region56: #{tpu_custom_call.1} parent=47 // pred_fallthru
          _
      $region48: #{tpu_custom_call.1} parent=5 // pred_fallthru
        _
    $region6: #{tpu_custom_call.1} parent=1 // loop_footer
      %s22 = sadd.s32 1, %s18
    $region7: #{tpu_custom_call.1} parent=1 // loop_footer_branch
      %17 = sbr.rel target = $region3
    $region8: #{tpu_custom_call.1} parent=1 // loop_exit
      _
    %325 = vsyncpa [#allocation5], 1
    %s326 = scalar_lea.sflag [#allocation5], 1
    %327 = vsyncpa %s326, 1
    %328 = vsyncpa [#allocation6], 1
    %s329 = scalar_lea.sflag [#allocation6], 1
    %330 = vsyncpa %s329, 1
    %331 = vsyncpa [#allocation9], 1
    %s332 = scalar_lea.sflag [#allocation9], 1
    %333 = vsyncpa %s332, 1

</llo_original>
